<compile_context>
chip_gen: v5e
topology: v5e:2x2
jax: 0.10.0
libtpu: 0.0.40
codegen_flags: <defaults>
</compile_context>

<pallas_src>
import jax
import jax.numpy as jnp
from jax.experimental import pallas as pl
from jax.experimental.pallas import tpu as pltpu

LANE = 128          # TPU lane width
SUBLANE_BF16 = 16   # bf16 sublane granule
MAX_BLOCK_B = 512   # largest batch tile (multiple of 128, comfortably in VMEM)


def _mlp_kernel(x_ref, w1_ref, b1_ref, w2_ref, b2_ref, o_ref):
    # Layer 1: bf16 operands on the MXU, f32 accumulation.
    h = jnp.dot(x_ref[...], w1_ref[...], preferred_element_type=jnp.float32)
    # Bias + ReLU in f32 on the VPU (keep the epilogue full precision).
    h = jnp.maximum(h + b1_ref[...], 0.0)
    # Layer 2: cast the activation to bf16 for the MXU, accumulate in f32.
    out = jnp.dot(h.astype(jnp.bfloat16), w2_ref[...],
                  preferred_element_type=jnp.float32)
    o_ref[...] = (out + b2_ref[...]).astype(o_ref.dtype)


def _choose_block_b(batch):
    """Batch tile: multiple of 16, capped at 512, >=2 grid blocks when possible."""
    b16 = ((batch + SUBLANE_BF16 - 1) // SUBLANE_BF16) * SUBLANE_BF16
    if b16 <= SUBLANE_BF16:
        return SUBLANE_BF16
    half = max(SUBLANE_BF16, (b16 // 2) // SUBLANE_BF16 * SUBLANE_BF16)
    return min(MAX_BLOCK_B, half)


@jax.jit
def test_network_forward(x, w1, b1, w2, b2):
    """Forward pass of TestNetwork.

    x : [B, D_in] float32
    w1: [D_in, 128], b1: [1, 128]  (transposed vs. torch nn.Linear.weight)
    w2: [128, A],    b2: [1, A]
    returns [B, A] in x.dtype
    """
    B, D_in = x.shape
    H = w1.shape[1]
    A = w2.shape[1]
    out_dtype = x.dtype

    # bf16 operands for the MXU; biases stay f32 for the epilogue.
    x_c = x.astype(jnp.bfloat16)
    w1_c = w1.astype(jnp.bfloat16)
    w2_c = w2.astype(jnp.bfloat16)
    b1_f = b1.reshape(1, H).astype(jnp.float32)
    b2_f = b2.reshape(1, A).astype(jnp.float32)

    # Lane-dense output: pad the action dim to a multiple of 128.
    A_pad = max(LANE, pl.cdiv(A, LANE) * LANE)
    if A_pad != A:
        w2_c = jnp.pad(w2_c, ((0, 0), (0, A_pad - A)))
        b2_f = jnp.pad(b2_f, ((0, 0), (0, A_pad - A)))

    # Batch tiling (pad B to a multiple of the tile).
    block_b = _choose_block_b(B)
    B_pad = pl.cdiv(B, block_b) * block_b
    if B_pad != B:
        x_c = jnp.pad(x_c, ((0, B_pad - B), (0, 0)))

    grid = (B_pad // block_b,)

    # On v7x (64 MiB VMEM) the resident W1/b1/W2/b2 specs could additionally be
    # single-buffered via pipeline_mode=pl.Buffered(1); at these weight sizes
    # the double-buffered footprint is tiny, so it is omitted for portability.
    out = pl.pallas_call(
        _mlp_kernel,
        out_shape=jax.ShapeDtypeStruct((B_pad, A_pad), jnp.float32),
        grid_spec=pltpu.PrefetchScalarGridSpec(
            num_scalar_prefetch=0,
            grid=grid,
            in_specs=[
                pl.BlockSpec((block_b, D_in), lambda i: (i, 0)),   # x tile
                pl.BlockSpec((D_in, H), lambda i: (0, 0)),         # W1 (resident)
                pl.BlockSpec((1, H), lambda i: (0, 0)),            # b1
                pl.BlockSpec((H, A_pad), lambda i: (0, 0)),        # W2 (resident, lane-padded)
                pl.BlockSpec((1, A_pad), lambda i: (0, 0)),        # b2 (lane-padded)
            ],
            out_specs=pl.BlockSpec((block_b, A_pad), lambda i: (i, 0)),
        ),
        compiler_params=pltpu.CompilerParams(
            dimension_semantics=("parallel",),        # batch tiles are independent
            vmem_limit_bytes=48 * 1024 * 1024,        # explicit, safe on all gens
        ),
    )(x_c, w1_c, b1_f, w2_c, b2_f)

    # Strip the batch / lane padding.
    return out[:B, :A].astype(out_dtype)


def reference_forward(x, w1, b1, w2, b2):
    h = jnp.maximum(x @ w1 + b1, 0.0)
    return h @ w2 + b2


if __name__ == "__main__":
    # Shapes implied by the module: Linear(input_shape, 128) -> ReLU -> Linear(128, n_actions).
    B = 40         # batch (exercises multi-block grid + batch padding)
    D_IN = 32      # input_shape
    HIDDEN = 128   # fixed by the module
    A = 10         # n_actions (exercises lane padding to 128)

    key = jax.random.PRNGKey(0)
    kx, kw1, kb1, kw2, kb2 = jax.random.split(key, 5)

    x = jax.random.normal(kx, (B, D_IN), dtype=jnp.float32)

    # Deterministic parameter init (mimics nn.Linear uniform(-1/sqrt(fan_in), 1/sqrt(fan_in))).
    lim1 = 1.0 / jnp.sqrt(jnp.float32(D_IN))
    w1 = jax.random.uniform(kw1, (D_IN, HIDDEN), jnp.float32, -lim1, lim1)
    b1 = jax.random.uniform(kb1, (1, HIDDEN), jnp.float32, -lim1, lim1)
    lim2 = 1.0 / jnp.sqrt(jnp.float32(HIDDEN))
    w2 = jax.random.uniform(kw2, (HIDDEN, A), jnp.float32, -lim2, lim2)
    b2 = jax.random.uniform(kb2, (1, A), jnp.float32, -lim2, lim2)

    out = test_network_forward(x, w1, b1, w2, b2)
    out = jax.block_until_ready(out)

    ref = reference_forward(x, w1, b1, w2, b2)
    assert out.shape == (B, A)
    # bf16 MXU operands with f32 accumulation -> compare with a bf16-level tolerance.
    assert jnp.allclose(out, ref, atol=2e-2, rtol=2e-2), "mismatch vs reference"

    print("KERNEL_OK")
</pallas_src>

<mosaic_0001>
module attributes {stable_mosaic.version = 11 : i64} {
  func.func @_mlp_kernel(%arg0: i32, %arg1: memref<16x32xbf16, #tpu.memory_space<vmem>>, %arg2: memref<32x128xbf16, #tpu.memory_space<vmem>>, %arg3: memref<1x128xf32, #tpu.memory_space<vmem>>, %arg4: memref<128x128xbf16, #tpu.memory_space<vmem>>, %arg5: memref<1x128xf32, #tpu.memory_space<vmem>>, %arg6: memref<16x128xf32, #tpu.memory_space<vmem>>) attributes {dimension_semantics = [#tpu.dimension_semantics<parallel>], iteration_bounds = array<i64: 3>, scalar_prefetch = 0 : i64, scratch_operands = 0 : i64, tpu.core_type = #tpu.core_type<tc>, window_params = [{transform_indices = @transform_0, window_bounds = array<i64: 16, 32>}, {pipeline_mode = #tpu.pipeline_mode<synchronous>, transform_indices = @transform_1, window_bounds = array<i64: 32, 128>}, {pipeline_mode = #tpu.pipeline_mode<synchronous>, transform_indices = @transform_2, window_bounds = array<i64: 1, 128>}, {pipeline_mode = #tpu.pipeline_mode<synchronous>, transform_indices = @transform_3, window_bounds = array<i64: 128, 128>}, {pipeline_mode = #tpu.pipeline_mode<synchronous>, transform_indices = @transform_4, window_bounds = array<i64: 1, 128>}, {transform_indices = @transform_5, window_bounds = array<i64: 16, 128>}]} {
    %c0 = arith.constant 0 : index
    %c0_0 = arith.constant 0 : index
    %0 = vector.load %arg1[%c0, %c0_0] : memref<16x32xbf16, #tpu.memory_space<vmem>>, vector<16x32xbf16>
    %c0_1 = arith.constant 0 : index
    %c0_2 = arith.constant 0 : index
    %1 = vector.load %arg2[%c0_1, %c0_2] : memref<32x128xbf16, #tpu.memory_space<vmem>>, vector<32x128xbf16>
    %cst = arith.constant dense<0.000000e+00> : vector<16x128xf32>
    %2 = tpu.matmul %0, %1, %cst {dimension_numbers = #tpu.dot_dimension_numbers<[1], [0], [0], [1], [0, 0, 1, 1], [], []>} : vector<16x32xbf16>, vector<32x128xbf16>, vector<16x128xf32> -> vector<16x128xf32>
    %c0_3 = arith.constant 0 : index
    %c0_4 = arith.constant 0 : index
    %3 = vector.load %arg3[%c0_3, %c0_4] : memref<1x128xf32, #tpu.memory_space<vmem>>, vector<1x128xf32>
    %4 = vector.broadcast %3 : vector<1x128xf32> to vector<16x128xf32>
    %5 = arith.addf %2, %4 : vector<16x128xf32>
    %cst_5 = arith.constant 0.000000e+00 : f32
    %6 = vector.broadcast %cst_5 : f32 to vector<16x128xf32>
    %7 = arith.maximumf %5, %6 : vector<16x128xf32>
    %8 = arith.truncf %7 : vector<16x128xf32> to vector<16x128xbf16>
    %c0_6 = arith.constant 0 : index
    %c0_7 = arith.constant 0 : index
    %9 = vector.load %arg4[%c0_6, %c0_7] : memref<128x128xbf16, #tpu.memory_space<vmem>>, vector<128x128xbf16>
    %cst_8 = arith.constant dense<0.000000e+00> : vector<16x128xf32>
    %10 = tpu.matmul %8, %9, %cst_8 {dimension_numbers = #tpu.dot_dimension_numbers<[1], [0], [0], [1], [0, 0, 1, 1], [], []>} : vector<16x128xbf16>, vector<128x128xbf16>, vector<16x128xf32> -> vector<16x128xf32>
    %c0_9 = arith.constant 0 : index
    %c0_10 = arith.constant 0 : index
    %11 = vector.load %arg5[%c0_9, %c0_10] : memref<1x128xf32, #tpu.memory_space<vmem>>, vector<1x128xf32>
    %12 = vector.broadcast %11 : vector<1x128xf32> to vector<16x128xf32>
    %13 = arith.addf %10, %12 : vector<16x128xf32>
    %c0_11 = arith.constant 0 : index
    %c0_12 = arith.constant 0 : index
    %14 = vector.load %arg6[%c0_11, %c0_12] : memref<16x128xf32, #tpu.memory_space<vmem>>, vector<16x128xf32>
    tpu.vector_store %arg6[%c0_11, %c0_12], %13 {strides = array<i32>} : memref<16x128xf32, #tpu.memory_space<vmem>>, vector<16x128xf32>,
    return
  }
  func.func @transform_0(%arg0: i32) -> (i32, i32) {
    %c0_i32 = arith.constant 0 : i32
    %c0_i32_0 = arith.constant 0 : i32
    return %arg0, %c0_i32 : i32, i32
  }
  func.func @transform_1(%arg0: i32) -> (i32, i32) {
    %c0_i32 = arith.constant 0 : i32
    %c0_i32_0 = arith.constant 0 : i32
    %c0_i32_1 = arith.constant 0 : i32
    return %c0_i32, %c0_i32_0 : i32, i32
  }
  func.func @transform_2(%arg0: i32) -> (i32, i32) {
    %c0_i32 = arith.constant 0 : i32
    %c0_i32_0 = arith.constant 0 : i32
    %c0_i32_1 = arith.constant 0 : i32
    return %c0_i32, %c0_i32_0 : i32, i32
  }
  func.func @transform_3(%arg0: i32) -> (i32, i32) {
    %c0_i32 = arith.constant 0 : i32
    %c0_i32_0 = arith.constant 0 : i32
    %c0_i32_1 = arith.constant 0 : i32
    return %c0_i32, %c0_i32_0 : i32, i32
  }
  func.func @transform_4(%arg0: i32) -> (i32, i32) {
    %c0_i32 = arith.constant 0 : i32
    %c0_i32_0 = arith.constant 0 : i32
    %c0_i32_1 = arith.constant 0 : i32
    return %c0_i32, %c0_i32_0 : i32, i32
  }
  func.func @transform_5(%arg0: i32) -> (i32, i32) {
    %c0_i32 = arith.constant 0 : i32
    %c0_i32_0 = arith.constant 0 : i32
    return %arg0, %c0_i32 : i32, i32
  }
}

</mosaic_0001>

<llo_original>
// kernel: test_network_forward.1
$region0: #{test_network_forward.1}
  #allocation0 [shape = 'u32[]', space=smem, size = 0x4, offset = 0x4, fixed_abs, tag = 'smem constant byte address 0x4 - core index']
  #allocation1 [shape = 'u32[72,128]{1,0:T(1,128)}', space=vmem, size = 0x9000, scoped, tag = 'internal scratch']
  %s0 = inlined_call_operand.vmem [shape: bf16[48,32], index: 0, kind: input, shape index: {}]
  %s1 = inlined_call_operand.vmem [shape: bf16[32,128], index: 1, kind: input, shape index: {}]
  %s2 = inlined_call_operand.vmem [shape: f32[1,128], index: 2, kind: input, shape index: {}]
  %s3 = inlined_call_operand.vmem [shape: bf16[128,128], index: 3, kind: input, shape index: {}]
  %s4 = inlined_call_operand.vmem [shape: f32[1,128], index: 4, kind: input, shape index: {}]
  %s5 = inlined_call_operand.vmem [shape: f32[48,128], index: 5, kind: output, shape index: {}]
  %s6 = sld [smem:[#allocation0]]
  $region53: #{test_network_forward.1} parent=0
    _
  %s8 = ssub.s32 1, %s6
  %s9 = scalar_select 0, %s8, %s6
  loop: start=0, step=1, limit=5
  $region2: #{test_network_forward.1} parent=0 // loop_pre_header
    _
  $region3: #{test_network_forward.1} parent=0 // loop_header
    %s11 = sphi 0, %s15
    %p12 = scmp.ge.s32.totalorder %s11, 5
    %s21 = sphi 0, %s23
    %s24 = sphi 0, %s21
    %s25 = sphi 0, %s24
    %s41 = sphi 0, %s25
    %s45 = sphi 0, %s45
    %s47 = sphi 0, %s45
    %s48 = sphi 0, %s47
    %s62 = sphi 0, %s48
    %s66 = sphi 0, %s66
    %s68 = sphi 0, %s66
    %s69 = sphi 0, %s68
    %s83 = sphi 0, %s69
    %s87 = sphi 0, %s87
    %s89 = sphi 0, %s87
    %s90 = sphi 0, %s89
    %s104 = sphi 0, %s90
    %s108 = sphi 0, %s108
    %s110 = sphi 0, %s108
    %s111 = sphi 0, %s110
    %s125 = sphi 0, %s111
    %s131 = sphi 0, %s133
    %s134 = sphi 0, %s131
    %s135 = sphi 0, %s134
    %s151 = sphi 0, %s135
  $region4: #{test_network_forward.1} parent=0 // loop_header_branch
    %14 = sbr.rel (%p12) target = $region8
  $region5: #{test_network_forward.1} parent=0 // loop_body
    %s16 = ssub.s32 %s11, 1
    %s17 = ssub.s32 %s11, 2
    %s18 = sadd.s32 %s11, 1
    %s19 = ssub.s32 %s11, %s18
    %p20 = scmp.eq.s32.totalorder %s19, 0
    %s22 = sadd.s32 %s21, 1
    %s23 = scalar_select %p20, %s21, %s22
    %p26 = pneg %p20
    %p27 = scmp.eq.s32.totalorder %s11, 2
    %p28 = por %p26, %p27
    %p29 = scmp.ne.s32.totalorder %s21, %s24
    %p30 = scmp.eq.s32.totalorder %s11, 0
    %p31 = por %p29, %p30
    %p32 = scmp.ne.s32.totalorder %s21, %s24
    %p33 = scmp.eq.s32.totalorder %s16, 2
    %p34 = por %p32, %p33
    %p35 = scmp.ne.s32.totalorder %s24, %s25
    %p36 = scmp.eq.s32.totalorder %s16, 0
    %p37 = por %p35, %p36
    %p38 = scmp.ne.s32.totalorder %s24, %s25
    %p39 = scmp.eq.s32.totalorder %s17, 2
    %p40 = por %p38, %p39
    %p42 = scmp.ne.s32.totalorder %s25, %s41
    %p43 = scmp.eq.s32.totalorder %s17, 0
    %p44 = por %p42, %p43
    %s46 = sadd.s32 %s45, 1
    %p49 = scmp.eq.s32.totalorder %s11, 2
    %p50 = scmp.ne.s32.totalorder %s45, %s47
    %p51 = scmp.eq.s32.totalorder %s11, 0
    %p52 = por %p50, %p51
    %p53 = scmp.ne.s32.totalorder %s45, %s47
    %p54 = scmp.eq.s32.totalorder %s16, 2
    %p55 = por %p53, %p54
    %p56 = scmp.ne.s32.totalorder %s47, %s48
    %p57 = scmp.eq.s32.totalorder %s16, 0
    %p58 = por %p56, %p57
    %p59 = scmp.ne.s32.totalorder %s47, %s48
    %p60 = scmp.eq.s32.totalorder %s17, 2
    %p61 = por %p59, %p60
    %p63 = scmp.ne.s32.totalorder %s48, %s62
    %p64 = scmp.eq.s32.totalorder %s17, 0
    %p65 = por %p63, %p64
    %s67 = sadd.s32 %s66, 1
    %p70 = scmp.eq.s32.totalorder %s11, 2
    %p71 = scmp.ne.s32.totalorder %s66, %s68
    %p72 = scmp.eq.s32.totalorder %s11, 0
    %p73 = por %p71, %p72
    %p74 = scmp.ne.s32.totalorder %s66, %s68
    %p75 = scmp.eq.s32.totalorder %s16, 2
    %p76 = por %p74, %p75
    %p77 = scmp.ne.s32.totalorder %s68, %s69
    %p78 = scmp.eq.s32.totalorder %s16, 0
    %p79 = por %p77, %p78
    %p80 = scmp.ne.s32.totalorder %s68, %s69
    %p81 = scmp.eq.s32.totalorder %s17, 2
    %p82 = por %p80, %p81
    %p84 = scmp.ne.s32.totalorder %s69, %s83
    %p85 = scmp.eq.s32.totalorder %s17, 0
    %p86 = por %p84, %p85
    %s88 = sadd.s32 %s87, 1
    %p91 = scmp.eq.s32.totalorder %s11, 2
    %p92 = scmp.ne.s32.totalorder %s87, %s89
    %p93 = scmp.eq.s32.totalorder %s11, 0
    %p94 = por %p92, %p93
    %p95 = scmp.ne.s32.totalorder %s87, %s89
    %p96 = scmp.eq.s32.totalorder %s16, 2
    %p97 = por %p95, %p96
    %p98 = scmp.ne.s32.totalorder %s89, %s90
    %p99 = scmp.eq.s32.totalorder %s16, 0
    %p100 = por %p98, %p99
    %p101 = scmp.ne.s32.totalorder %s89, %s90
    %p102 = scmp.eq.s32.totalorder %s17, 2
    %p103 = por %p101, %p102
    %p105 = scmp.ne.s32.totalorder %s90, %s104
    %p106 = scmp.eq.s32.totalorder %s17, 0
    %p107 = por %p105, %p106
    %s109 = sadd.s32 %s108, 1
    %p112 = scmp.eq.s32.totalorder %s11, 2
    %p113 = scmp.ne.s32.totalorder %s108, %s110
    %p114 = scmp.eq.s32.totalorder %s11, 0
    %p115 = por %p113, %p114
    %p116 = scmp.ne.s32.totalorder %s108, %s110
    %p117 = scmp.eq.s32.totalorder %s16, 2
    %p118 = por %p116, %p117
    %p119 = scmp.ne.s32.totalorder %s110, %s111
    %p120 = scmp.eq.s32.totalorder %s16, 0
    %p121 = por %p119, %p120
    %p122 = scmp.ne.s32.totalorder %s110, %s111
    %p123 = scmp.eq.s32.totalorder %s17, 2
    %p124 = por %p122, %p123
    %p126 = scmp.ne.s32.totalorder %s111, %s125
    %p127 = scmp.eq.s32.totalorder %s17, 0
    %p128 = por %p126, %p127
    %s129 = ssub.s32 %s11, %s18
    %p130 = scmp.eq.s32.totalorder %s129, 0
    %s132 = sadd.s32 %s131, 1
    %s133 = scalar_select %p130, %s131, %s132
    %p136 = pneg %p130
    %p137 = scmp.eq.s32.totalorder %s11, 2
    %p138 = por %p136, %p137
    %p139 = scmp.ne.s32.totalorder %s131, %s134
    %p140 = scmp.eq.s32.totalorder %s11, 0
    %p141 = por %p139, %p140
    %p142 = scmp.ne.s32.totalorder %s131, %s134
    %p143 = scmp.eq.s32.totalorder %s16, 2
    %p144 = por %p142, %p143
    %p145 = scmp.ne.s32.totalorder %s134, %s135
    %p146 = scmp.eq.s32.totalorder %s16, 0
    %p147 = por %p145, %p146
    %p148 = scmp.ne.s32.totalorder %s134, %s135
    %p149 = scmp.eq.s32.totalorder %s17, 2
    %p150 = por %p148, %p149
    %p152 = scmp.ne.s32.totalorder %s135, %s151
    %p153 = scmp.eq.s32.totalorder %s17, 0
    %p154 = por %p152, %p153
    %p155 = scmp.le.s32.totalorder 1, %s11
    %p156 = scmp.lt.s32.totalorder %s11, 4
    %p157 = pnand %p155, %p156
    %p158 = pneg %p157
    // Predicated region
    $region9: #{test_network_forward.1} parent=5 // pred_check
      _
    $region10: #{test_network_forward.1} parent=5 // pred_check_branch
      %160 = sbr.rel (%p157) target = $region12
    $region11: #{test_network_forward.1} parent=5 // pred_region
      %s161 = ssub.s32 %s11, 1
      // Predicated region
      $region13: #{test_network_forward.1} parent=11 // pred_check
        %p162 = pneg %p58
      $region14: #{test_network_forward.1} parent=11 // pred_check_branch
        %164 = sbr.rel (%p162) target = $region16
      $region15: #{test_network_forward.1} parent=11 // pred_region
        _
      $region16: #{test_network_forward.1} parent=11 // pred_fallthru
        _
      // Predicated region
      $region17: #{test_network_forward.1} parent=11 // pred_check
        %p165 = pneg %p79
      $region18: #{test_network_forward.1} parent=11 // pred_check_branch
        %167 = sbr.rel (%p165) target = $region20
      $region19: #{test_network_forward.1} parent=11 // pred_region
        _
      $region20: #{test_network_forward.1} parent=11 // pred_fallthru
        _
      // Predicated region
      $region21: #{test_network_forward.1} parent=11 // pred_check
        %p168 = pneg %p100
      $region22: #{test_network_forward.1} parent=11 // pred_check_branch
        %170 = sbr.rel (%p168) target = $region24
      $region23: #{test_network_forward.1} parent=11 // pred_region
        _
      $region24: #{test_network_forward.1} parent=11 // pred_fallthru
        _
      // Predicated region
      $region25: #{test_network_forward.1} parent=11 // pred_check
        %p171 = pneg %p121
      $region26: #{test_network_forward.1} parent=11 // pred_check_branch
        %173 = sbr.rel (%p171) target = $region28
      $region27: #{test_network_forward.1} parent=11 // pred_region
        _
      $region28: #{test_network_forward.1} parent=11 // pred_fallthru
        _
    $region12: #{test_network_forward.1} parent=5 // pred_fallthru
      _
    %p174 = scmp.lt.s32.totalorder %s11, 3
    // Predicated region
    $region29: #{test_network_forward.1} parent=5 // pred_check
      %p175 = pneg %p174
    $region30: #{test_network_forward.1} parent=5 // pred_check_branch
      %177 = sbr.rel (%p175) target = $region32
    $region31: #{test_network_forward.1} parent=5 // pred_region
      // Predicated region
      $region33: #{test_network_forward.1} parent=31 // pred_check
        %p178 = pneg %p31
      $region34: #{test_network_forward.1} parent=31 // pred_check_branch
        %180 = sbr.rel (%p178) target = $region36
      $region35: #{test_network_forward.1} parent=31 // pred_region
        %s181 = smul.u32 2, %s11
        %p182 = scmp.lt.s32.totalorder %s181, 5
        %s183 = scalar_select %p182, %s181, 5
        %s184 = smul.addr %s183, 4
        %s185 = scalar_lea.vmem %s0, %s184
        %s186 = smul.u32 2, %s11
      $region36: #{test_network_forward.1} parent=31 // pred_fallthru
        _
    $region32: #{test_network_forward.1} parent=5 // pred_fallthru
      _
    %p187 = scmp.le.s32.totalorder 1, %s11
    %p188 = scmp.lt.s32.totalorder %s11, 4
    %p189 = pnand %p187, %p188
    %p190 = pneg %p189
    // Predicated region
    $region37: #{test_network_forward.1} parent=5 // pred_check
      _
    $region38: #{test_network_forward.1} parent=5 // pred_check_branch
      %192 = sbr.rel (%p189) target = $region40
    $region39: #{test_network_forward.1} parent=5 // pred_region
      %s193 = ssub.s32 %s11, 1
      %s194 = smul.u32 2, %s16
      %p195 = scmp.lt.s32.totalorder %s194, 5
      %s196 = scalar_select %p195, %s194, 5
      %s197 = smul.addr %s196, 4
      %s198 = scalar_lea.vmem %s0, %s197
      %p199 = pneg %p37
      %p200 = pneg %p34
      %p201 = pneg %p58
      %p202 = pneg %p55
      %p203 = pneg %p79
      %p204 = pneg %p76
      %p205 = pneg %p100
      %p206 = pneg %p97
      %p207 = pneg %p121
      %p208 = pneg %p118
      %p209 = pneg %p147
      %p210 = pneg %p144
      %s211 = smul.u32 2, %s16
      %p212 = scmp.lt.s32.totalorder %s211, 5
      %s213 = scalar_select %p212, %s211, 5
      %s214 = smul.addr %s213, 8
      %s215 = scalar_lea.vmem %s5, %s214
      %s216 = smul.u32 2, %s16
      %p217 = scmp.lt.s32.totalorder %s216, 5
      %s218 = scalar_select %p217, %s216, 5
      %s219 = smul.addr %s218, 4
      %s220 = scalar_lea.vmem %s0, %s219
      %s221 = smul.u32 2, %s16
      %s222 = smul.u32 2, %s16
      %p223 = scmp.lt.s32.totalorder %s222, 5
      %s224 = scalar_select %p223, %s222, 5
      %s225 = smul.addr %s224, 8
      %s226 = scalar_lea.vmem %s5, %s225
      %s227 = smul.u32 2, %s16
      %v229 = vld [vmem:[%s220] sm:$0xf]
      %v230 = vld [vmem:[%s220 + $0x4] sm:$0xf]
      %v231 = vld [vmem:[%s1] sm:$0xf]
      %v232 = vld [vmem:[%s1 + $0x4] sm:$0xf]
      %v233 = vld [vmem:[%s1 + $0x8] sm:$0xf]
      %v234 = vld [vmem:[%s1 + $0xc] sm:$0xf]
      %v235 = vld [vmem:[%s2] sm:$0x1]
      %v237 = vperm.slane %v235, 0
      %v241 = vunpack.c.l.b16 %v229
      %v242 = vunpack.c.l.b16 %v230
      %v243 = vpack.c.b16 %v242, %v241
      %v248 = vunpack.c.l.b16 %v231
      %v249 = vunpack.c.l.b16 %v232
      %v250 = vunpack.c.l.b16 %v233
      %v251 = vunpack.c.l.b16 %v234
      %v252 = vpack.c.b16 %v249, %v248
      %v253 = vpack.c.b16 %v251, %v250
      %vm256 = vcmask 261120
      %v258 = vsel %vm256, %v243, 0
      %260 = vmatpush.bf16.msra.mxu0 0
      %261 = vmatpush.bf16.msra.mxu0 0
      %262 = vmatpush.bf16.msra.mxu0 0
      %263 = vmatpush.bf16.msra.mxu0 0
      %264 = vmatpush.bf16.msra.mxu0 0
      %265 = vmatpush.bf16.msra.mxu0 0
      %266 = vmatpush.bf16.msra.mxu0 %v253
      %267 = vmatpush.bf16.msra.mxu0 %v252
      %268 = vmatmul.bf16.gmra.mxu0 %v258
      %v269 = vpop.f32.mrf.mxu0
      %v270 = vadd.f32 %v237, %v269
      %v271 = vpop.f32.mrf.mxu0
      %v272 = vadd.f32 %v237, %v271
      %273 = vdwg.mxu0
      %v274 = vmax.f32 %v270, 0.0
      %v275 = vmax.f32 %v272, 0.0
      %v276 = vpack.c.bf16 %v275, %v274
      %v277 = vld [vmem:[%s3] sm:$0xf]
      %v278 = vld [vmem:[%s3 + $0x4] sm:$0xf]
      %v279 = vld [vmem:[%s3 + $0x8] sm:$0xf]
      %v280 = vld [vmem:[%s3 + $0xc] sm:$0xf]
      %v281 = vld [vmem:[%s3 + $0x10] sm:$0xf]
      %v282 = vld [vmem:[%s3 + $0x14] sm:$0xf]
      %v283 = vld [vmem:[%s3 + $0x18] sm:$0xf]
      %v284 = vld [vmem:[%s3 + $0x1c] sm:$0xf]
      %v285 = vld [vmem:[%s3 + $0x20] sm:$0xf]
      %v286 = vld [vmem:[%s3 + $0x24] sm:$0xf]
      %v287 = vld [vmem:[%s3 + $0x28] sm:$0xf]
      %v288 = vld [vmem:[%s3 + $0x2c] sm:$0xf]
      %v289 = vld [vmem:[%s3 + $0x30] sm:$0xf]
      %v290 = vld [vmem:[%s3 + $0x34] sm:$0xf]
      %v291 = vld [vmem:[%s3 + $0x38] sm:$0xf]
      %v292 = vld [vmem:[%s3 + $0x3c] sm:$0xf]
      %v293 = vld [vmem:[%s4] sm:$0x1]
      %v295 = vperm.slane %v293, 0
      %v313 = vunpack.c.l.b16 %v277
      %v314 = vunpack.c.l.b16 %v278
      %v315 = vunpack.c.l.b16 %v279
      %v316 = vunpack.c.l.b16 %v280
      %v317 = vunpack.c.l.b16 %v281
      %v318 = vunpack.c.l.b16 %v282
      %v319 = vunpack.c.l.b16 %v283
      %v320 = vunpack.c.l.b16 %v284
      %v321 = vunpack.c.l.b16 %v285
      %v322 = vunpack.c.l.b16 %v286
      %v323 = vunpack.c.l.b16 %v287
      %v324 = vunpack.c.l.b16 %v288
      %v325 = vunpack.c.l.b16 %v289
      %v326 = vunpack.c.l.b16 %v290
      %v327 = vunpack.c.l.b16 %v291
      %v328 = vunpack.c.l.b16 %v292
      %v329 = vpack.c.b16 %v314, %v313
      %v330 = vpack.c.b16 %v316, %v315
      %v331 = vpack.c.b16 %v318, %v317
      %v332 = vpack.c.b16 %v320, %v319
      %v333 = vpack.c.b16 %v322, %v321
      %v334 = vpack.c.b16 %v324, %v323
      %v335 = vpack.c.b16 %v326, %v325
      %v336 = vpack.c.b16 %v328, %v327
      %345 = vmatpush.bf16.msra.mxu0 %v336
      %346 = vmatpush.bf16.msra.mxu0 %v335
      %347 = vmatpush.bf16.msra.mxu0 %v334
      %348 = vmatpush.bf16.msra.mxu0 %v333
      %349 = vmatpush.bf16.msra.mxu0 %v332
      %350 = vmatpush.bf16.msra.mxu0 %v331
      %351 = vmatpush.bf16.msra.mxu0 %v330
      %352 = vmatpush.bf16.msra.mxu0 %v329
      %353 = vmatmul.bf16.gmra.mxu0 %v276
      %v354 = vpop.f32.mrf.mxu0
      %v355 = vadd.f32 %v295, %v354
      %v356 = vpop.f32.mrf.mxu0
      %v357 = vadd.f32 %v295, %v356
      %358 = vdwg.mxu0
      %359 = vst [vmem:[%s226] sm:$0xff] %v355
      %360 = vst [vmem:[%s226 + $0x8] sm:$0xff] %v357
      %s361 = smul.u32 2, %s16
      %p362 = scmp.lt.s32.totalorder %s361, 5
      %s363 = scalar_select %p362, %s361, 5
      %s364 = smul.addr %s363, 8
      %s365 = scalar_lea.vmem %s5, %s364
      // Predicated region
      $region41: #{test_network_forward.1} parent=39 // pred_check
        %p366 = pneg %p144
      $region42: #{test_network_forward.1} parent=39 // pred_check_branch
        %368 = sbr.rel (%p366) target = $region44
      $region43: #{test_network_forward.1} parent=39 // pred_region
        %s369 = smul.u32 2, %s16
      $region44: #{test_network_forward.1} parent=39 // pred_fallthru
        _
    $region40: #{test_network_forward.1} parent=5 // pred_fallthru
      _
    %p370 = scmp.le.s32.totalorder 2, %s11
    // Predicated region
    $region45: #{test_network_forward.1} parent=5 // pred_check
      %p371 = pneg %p370
    $region46: #{test_network_forward.1} parent=5 // pred_check_branch
      %373 = sbr.rel (%p371) target = $region48
    $region47: #{test_network_forward.1} parent=5 // pred_region
      %s374 = ssub.s32 %s11, 2
      // Predicated region
      $region49: #{test_network_forward.1} parent=47 // pred_check
        %p375 = pneg %p150
      $region50: #{test_network_forward.1} parent=47 // pred_check_branch
        %377 = sbr.rel (%p375) target = $region52
      $region51: #{test_network_forward.1} parent=47 // pred_region
        %s378 = smul.u32 2, %s17
        %p379 = scmp.lt.s32.totalorder %s378, 5
        %s380 = scalar_select %p379, %s378, 5
        %s381 = smul.addr %s380, 8
        %s382 = scalar_lea.vmem %s5, %s381
      $region52: #{test_network_forward.1} parent=47 // pred_fallthru
        _
    $region48: #{test_network_forward.1} parent=5 // pred_fallthru
      _
  $region6: #{test_network_forward.1} parent=0 // loop_footer
    %s15 = sadd.s32 1, %s11
  $region7: #{test_network_forward.1} parent=0 // loop_footer_branch
    %10 = sbr.rel target = $region3
  $region8: #{test_network_forward.1} parent=0 // loop_exit
    _

</llo_original>
